<compile_context>
chip_gen: v7x
topology: tpu7x:2x2x1
jax: 0.10.0
libtpu: 0.0.40
codegen_flags: <defaults>
</compile_context>

<pallas_src>
import jax
import jax.numpy as jnp
import numpy as np
from jax.experimental import pallas as pl
from jax.experimental.pallas import tpu as pltpu


def _round_up(x, m):
    return ((x + m - 1) // m) * m


# --------------------------------------------------------------------------- #
# Kernel 1+3: tiled matmul + bias  (o = x @ w + b), parallel over N and M.
# x/w arrive bf16 (MXU-native); accumulation and bias add stay f32.
# --------------------------------------------------------------------------- #
def dense_bias_kernel(x_ref, w_ref, b_ref, o_ref):
    acc = jnp.dot(x_ref[...], w_ref[...], preferred_element_type=jnp.float32)
    o_ref[...] = (acc + b_ref[...]).astype(o_ref.dtype)


def dense_bias_pallas(x, w, b, out_dtype=jnp.float32):
    """x: (M, K), w: (K, N), b: (1, N) -> (M, N)."""
    M, K = x.shape
    N = w.shape[1]

    # Lane-dense N tiles; pad V (etc.) up to a 256/128 multiple instead of a
    # single huge masked block.
    if N % 256 == 0:
        tn, n_pad = 256, N
    elif N % 128 == 0:
        tn, n_pad = 128, N
    else:
        tn = 256 if N > 256 else 128
        n_pad = _round_up(N, tn)
        w = jnp.pad(w, ((0, 0), (0, n_pad - N)))
        b = jnp.pad(b, ((0, 0), (0, n_pad - N)))

    # Sublane-full M tiles (multiple of 16 so bf16 blocks stay tile-aligned);
    # one M tile up to 1024 rows so the big weight streams from HBM only once.
    tm = _round_up(M, 16) if M <= 1024 else 512
    m_pad = _round_up(M, tm)
    if m_pad != M:
        x = jnp.pad(x, ((0, m_pad - M), (0, 0)))

    # N axis outer: the (K, tn) weight tile is reused across all inner M tiles.
    grid = (n_pad // tn, m_pad // tm)

    itile = (tm * K * x.dtype.itemsize + K * tn * w.dtype.itemsize
             + tn * b.dtype.itemsize)
    otile = tm * tn * jnp.dtype(out_dtype).itemsize
    vmem_limit = int(min(64 << 20, max(32 << 20, 2 * (itile + otile) + (4 << 20))))

    out = pl.pallas_call(
        dense_bias_kernel,
        out_shape=jax.ShapeDtypeStruct((m_pad, n_pad), out_dtype),
        grid_spec=pltpu.PrefetchScalarGridSpec(
            num_scalar_prefetch=0,
            grid=grid,
            in_specs=[
                pl.BlockSpec((tm, K), lambda j, i: (i, 0)),
                pl.BlockSpec((K, tn), lambda j, i: (0, j)),
                pl.BlockSpec((1, tn), lambda j, i: (0, j)),
            ],
            out_specs=pl.BlockSpec((tm, tn), lambda j, i: (i, j)),
        ),
        compiler_params=pltpu.CompilerParams(
            dimension_semantics=("parallel", "parallel"),
            vmem_limit_bytes=vmem_limit),
    )(x, w, b)

    if m_pad != M or n_pad != N:
        out = out[:M, :N]
    return out


# --------------------------------------------------------------------------- #
# Kernel 2: sequential LSTM recurrence, T-chunked grid, h/c in VMEM scratch.
# --------------------------------------------------------------------------- #
def lstm_recurrence_kernel(gx_ref, whh_ref, h_all_ref, h_sc, c_sc):
    """gx_ref: (Tc, Bc, 4H) bf16 precomputed x@W_ih^T + bias. Emits h_t per step."""
    t_chunk = gx_ref.shape[0]
    Bc = h_sc.shape[0]
    H = h_sc.shape[-1]

    # New batch chunk -> reset state (scratch persists across grid steps).
    @pl.when(pl.program_id(1) == 0)
    def _():
        h_sc[...] = jnp.zeros_like(h_sc)
        c_sc[...] = jnp.zeros_like(c_sc)

    whh = whh_ref[...]                       # (H, 4H) bf16, loop-invariant

    def step(t, carry):
        h = h_sc[...]                        # f32 state
        c = c_sc[...]
        # MXU in bf16, accumulate f32; gate math stays f32 (v5e-safe).
        gates = (gx_ref[t].astype(jnp.float32)
                 + jnp.dot(h.astype(jnp.bfloat16), whh,
                           preferred_element_type=jnp.float32))
        # PyTorch gate order: i, f, g, o (H is a multiple of 128 -> free views).
        i_g = jax.nn.sigmoid(gates[:, 0 * H:1 * H])
        f_g = jax.nn.sigmoid(gates[:, 1 * H:2 * H])
        g_g = jnp.tanh(gates[:, 2 * H:3 * H])
        o_g = jax.nn.sigmoid(gates[:, 3 * H:4 * H])
        c_new = f_g * c + i_g * g_g
        h_new = o_g * jnp.tanh(c_new)
        c_sc[...] = c_new
        h_sc[...] = h_new
        h_all_ref[t] = h_new.astype(h_all_ref.dtype)
        return carry

    # Full unroll only when live values fit comfortably in vregs; else partial.
    unroll = True if (Bc * H) <= 128 * 128 else 2
    jax.lax.fori_loop(0, t_chunk, step, 0, unroll=unroll)


def lstm_recurrence_pallas(gates_x, whh_t, out_dtype=jnp.bfloat16):
    """gates_x: (T, B, 4H) bf16, whh_t: (H, 4H) bf16 -> h_all (T, B, H)."""
    T, B, fourH = gates_x.shape
    H = whh_t.shape[0]

    # v7x megacore: split batch across the two TensorCores when halves stay
    # (16,128)-tile aligned for bf16. No effect on 1-TC chips.
    nb = 2 if (B % 32 == 0) else 1
    Bc = B // nb

    # T-chunked grid: bounds VMEM per step and restores gx prefetch / h_all
    # writeback overlap with the serial matmul chain.
    t_chunk = T if T <= 8 else 8
    t_pad = _round_up(T, t_chunk)
    if t_pad != T:
        gates_x = jnp.pad(gates_x, ((0, t_pad - T), (0, 0), (0, 0)))

    grid = (nb, t_pad // t_chunk)

    gx_blk = t_chunk * Bc * fourH * gates_x.dtype.itemsize
    ho_blk = t_chunk * Bc * H * jnp.dtype(out_dtype).itemsize
    whh_b = H * fourH * whh_t.dtype.itemsize
    scr_b = 2 * Bc * H * 4
    vmem_limit = int(min(64 << 20,
                         max(32 << 20,
                             2 * (gx_blk + ho_blk + whh_b) + scr_b + (4 << 20))))

    out = pl.pallas_call(
        lstm_recurrence_kernel,
        out_shape=jax.ShapeDtypeStruct((t_pad, B, H), out_dtype),
        grid_spec=pltpu.PrefetchScalarGridSpec(
            num_scalar_prefetch=0,
            grid=grid,
            in_specs=[
                pl.BlockSpec((t_chunk, Bc, fourH), lambda b, t: (t, b, 0)),
                pl.BlockSpec((H, fourH), lambda b, t: (0, 0)),   # DMA'd once
            ],
            out_specs=pl.BlockSpec((t_chunk, Bc, H), lambda b, t: (t, b, 0)),
            scratch_shapes=[
                pltpu.VMEM((Bc, H), jnp.float32),    # h state (persists)
                pltpu.VMEM((Bc, H), jnp.float32),    # c state (persists)
            ],
        ),
        compiler_params=pltpu.CompilerParams(
            dimension_semantics=("parallel", "arbitrary"),
            vmem_limit_bytes=vmem_limit),
    )(gates_x, whh_t)
    return out[:T] if t_pad != T else out


# --------------------------------------------------------------------------- #
# Forward pass (mirrors LSTMDecoder.forward in eval mode).
# --------------------------------------------------------------------------- #
def lstm_decoder_forward(caption, image_feature, params):
    """caption: (B, Tc) int32, image_feature: (B, E). Returns logits (B, Tc, V)."""
    emb_table = params["embed"]
    tok = caption[:, :-1]
    embeddings = jnp.take(emb_table, tok, axis=0)                         # (B, Tc-1, E)
    seq = jnp.concatenate(
        [image_feature[:, None, :].astype(emb_table.dtype), embeddings], axis=1)
    x_tbe = jnp.transpose(seq, (1, 0, 2)).astype(jnp.float32)             # (T, B, E)
    T, B, E = x_tbe.shape

    w_hh = params["w_hh"]
    H = w_hh.shape[1]
    assert H % 128 == 0, "hidden_size must be a multiple of 128 for aligned gate slices"
    V = params["w_out"].shape[0]

    # bf16 MXU operands; accumulation, biases and gate math remain f32.
    wih_t = jnp.transpose(params["w_ih"]).astype(jnp.bfloat16)            # (E, 4H)
    whh_t = jnp.transpose(w_hh).astype(jnp.bfloat16)                      # (H, 4H)
    wout_t = jnp.transpose(params["w_out"]).astype(jnp.bfloat16)          # (H, V)
    bg = (params["b_ih"] + params["b_hh"]).reshape(1, 4 * H).astype(jnp.float32)
    bo = params["b_out"].reshape(1, V).astype(jnp.float32)

    # (1) batched input-gate precompute: one (T*B, E) x (E, 4H) matmul; bf16 out.
    x_flat = x_tbe.reshape(T * B, E).astype(jnp.bfloat16)
    gates_x = dense_bias_pallas(x_flat, wih_t, bg,
                                out_dtype=jnp.bfloat16).reshape(T, B, 4 * H)

    # (2) serial recurrence: only h @ W_hh + gate nonlinearities per step.
    h_all = lstm_recurrence_pallas(gates_x, whh_t, out_dtype=jnp.bfloat16)  # (T, B, H)

    # (3) batched vocab projection hoisted out of the serial loop.
    h_flat = h_all.reshape(T * B, H)
    logits_flat = dense_bias_pallas(h_flat, wout_t, bo, out_dtype=jnp.float32)
    logits = logits_flat.reshape(T, B, V)

    # back to batch_first (B, T, V); dropout is identity in eval mode.
    return jnp.transpose(logits, (1, 0, 2))


# --------------------------------------------------------------------------- #
# Pure-JAX f32 reference (lax.scan) for correctness checking.
# --------------------------------------------------------------------------- #
def lstm_decoder_reference(caption, image_feature, params):
    emb_table = params["embed"]
    tok = caption[:, :-1]
    embeddings = jnp.take(emb_table, tok, axis=0)
    seq = jnp.concatenate([image_feature[:, None, :], embeddings], axis=1)
    x_tbe = jnp.transpose(seq, (1, 0, 2)).astype(jnp.float32)

    H = params["w_hh"].shape[1]
    B = x_tbe.shape[1]

    def step(carry, x_t):
        h, c = carry
        gates = (x_t @ params["w_ih"].T + params["b_ih"]
                 + h @ params["w_hh"].T + params["b_hh"])
        i = jax.nn.sigmoid(gates[:, 0 * H:1 * H])
        f = jax.nn.sigmoid(gates[:, 1 * H:2 * H])
        g = jnp.tanh(gates[:, 2 * H:3 * H])
        o = jax.nn.sigmoid(gates[:, 3 * H:4 * H])
        c = f * c + i * g
        h = o * jnp.tanh(c)
        return (h, c), h

    h0 = jnp.zeros((B, H), jnp.float32)
    c0 = jnp.zeros((B, H), jnp.float32)
    _, hs = jax.lax.scan(step, (h0, c0), x_tbe)          # (T, B, H)
    logits = hs @ params["w_out"].T + params["b_out"]    # (T, B, V)
    return jnp.transpose(logits, (1, 0, 2))


if __name__ == "__main__":
    # Small shapes consistent with the module (scaled down from 512/vocab).
    B = 2            # batch
    Tc = 8           # caption length (forward drops last token, prepends image feat)
    E = 128          # embed_dim == image feature dim
    H = 128          # hidden_size
    V = 256          # vocab_size

    key = jax.random.PRNGKey(0)
    ks = jax.random.split(key, 9)
    scale = 0.1
    params = {
        "embed": jax.random.normal(ks[0], (V, E), jnp.float32) * scale,
        "w_ih":  jax.random.normal(ks[1], (4 * H, E), jnp.float32) * scale,
        "w_hh":  jax.random.normal(ks[2], (4 * H, H), jnp.float32) * scale,
        "b_ih":  jax.random.normal(ks[3], (4 * H,), jnp.float32) * scale,
        "b_hh":  jax.random.normal(ks[4], (4 * H,), jnp.float32) * scale,
        "w_out": jax.random.normal(ks[5], (V, H), jnp.float32) * scale,
        "b_out": jax.random.normal(ks[6], (V,), jnp.float32) * scale,
    }

    caption = jax.random.randint(ks[7], (B, Tc), 0, V, dtype=jnp.int32)
    image_feature = jax.random.normal(ks[8], (B, E), jnp.float32)

    logits = lstm_decoder_forward(caption, image_feature, params)
    logits = jax.block_until_ready(logits)
    assert logits.shape == (B, Tc, V), logits.shape

    ref = jax.block_until_ready(lstm_decoder_reference(caption, image_feature, params))
    # bf16 MXU operands + bf16 intermediates -> looser tolerance vs f32 reference.
    np.testing.assert_allclose(np.asarray(logits), np.asarray(ref),
                               rtol=5e-2, atol=5e-2)

    print("KERNEL_OK")
</pallas_src>

<mosaic_0001>
module attributes {stable_mosaic.version = 11 : i64} {
  func.func @dense_bias_kernel(%arg0: i32, %arg1: i32, %arg2: memref<16x128xbf16, #tpu.memory_space<vmem>>, %arg3: memref<128x256xbf16, #tpu.memory_space<vmem>>, %arg4: memref<1x256xf32, #tpu.memory_space<vmem>>, %arg5: memref<16x256xbf16, #tpu.memory_space<vmem>>) attributes {dimension_semantics = [#tpu.dimension_semantics<parallel>, #tpu.dimension_semantics<parallel>], iteration_bounds = array<i64: 2, 1>, scalar_prefetch = 0 : i64, scratch_operands = 0 : i64, tpu.core_type = #tpu.core_type<tc>, window_params = [{transform_indices = @transform_0, window_bounds = array<i64: 16, 128>}, {transform_indices = @transform_1, window_bounds = array<i64: 128, 256>}, {transform_indices = @transform_2, window_bounds = array<i64: 1, 256>}, {transform_indices = @transform_3, window_bounds = array<i64: 16, 256>}]} {
    %c0 = arith.constant 0 : index
    %c0_0 = arith.constant 0 : index
    %0 = vector.load %arg2[%c0, %c0_0] : memref<16x128xbf16, #tpu.memory_space<vmem>>, vector<16x128xbf16>
    %c0_1 = arith.constant 0 : index
    %c0_2 = arith.constant 0 : index
    %1 = vector.load %arg3[%c0_1, %c0_2] : memref<128x256xbf16, #tpu.memory_space<vmem>>, vector<128x256xbf16>
    %cst = arith.constant dense<0.000000e+00> : vector<16x256xf32>
    %2 = tpu.matmul %0, %1, %cst {dimension_numbers = #tpu.dot_dimension_numbers<[1], [0], [0], [1], [0, 0, 1, 1], [], []>} : vector<16x128xbf16>, vector<128x256xbf16>, vector<16x256xf32> -> vector<16x256xf32>
    %c0_3 = arith.constant 0 : index
    %c0_4 = arith.constant 0 : index
    %3 = vector.load %arg4[%c0_3, %c0_4] : memref<1x256xf32, #tpu.memory_space<vmem>>, vector<1x256xf32>
    %4 = vector.broadcast %3 : vector<1x256xf32> to vector<16x256xf32>
    %5 = arith.addf %2, %4 : vector<16x256xf32>
    %6 = arith.truncf %5 : vector<16x256xf32> to vector<16x256xbf16>
    %c0_5 = arith.constant 0 : index
    %c0_6 = arith.constant 0 : index
    %7 = vector.load %arg5[%c0_5, %c0_6] : memref<16x256xbf16, #tpu.memory_space<vmem>>, vector<16x256xbf16>
    tpu.vector_store %arg5[%c0_5, %c0_6], %6 {strides = array<i32>} : memref<16x256xbf16, #tpu.memory_space<vmem>>, vector<16x256xbf16>,
    return
  }
  func.func @transform_0(%arg0: i32, %arg1: i32) -> (i32, i32) {
    %c0_i32 = arith.constant 0 : i32
    %c0_i32_0 = arith.constant 0 : i32
    return %arg1, %c0_i32 : i32, i32
  }
  func.func @transform_1(%arg0: i32, %arg1: i32) -> (i32, i32) {
    %c0_i32 = arith.constant 0 : i32
    %c0_i32_0 = arith.constant 0 : i32
    return %c0_i32, %arg0 : i32, i32
  }
  func.func @transform_2(%arg0: i32, %arg1: i32) -> (i32, i32) {
    %c0_i32 = arith.constant 0 : i32
    %c0_i32_0 = arith.constant 0 : i32
    return %c0_i32, %arg0 : i32, i32
  }
  func.func @transform_3(%arg0: i32, %arg1: i32) -> (i32, i32) {
    %c0_i32 = arith.constant 0 : i32
    return %arg1, %arg0 : i32, i32
  }
}

</mosaic_0001>

<llo_original>
// kernel: tpu_custom_call.1
$region0: #{tpu_custom_call.1}
  #allocation0 [shape = 'u32[]', space=smem, size = 0x4, offset = 0x4, fixed_abs, tag = 'smem constant byte address 0x4 - core index']
  #allocation1 [shape = 'u32[144,128]{1,0:T(1,128)}', space=vmem, size = 0x12000, scoped, tag = 'internal scratch']
  %s0 = inlined_call_operand.hbm [shape: bf16[16,128], index: 0, kind: input, shape index: {}]
  %s1 = inlined_call_operand.hbm [shape: bf16[128,512], index: 1, kind: input, shape index: {}]
  %s2 = inlined_call_operand.vmem [shape: f32[1,512], index: 2, kind: input, shape index: {}]
  %s3 = inlined_call_operand.hbm [shape: bf16[16,512], index: 3, kind: output, shape index: {}]
  %s4 = sld [smem:[#allocation0]]
  $region53: #{tpu_custom_call.1} parent=0
    _
  %s6 = ssub.s32 1, %s4
  %s7 = scalar_select 0, %s6, %s4
  $region1: #{tpu_custom_call.1} parent=0
    #allocation2 [shape = 'u8[4096]{0}', space=vmem, size = 0x1000, scoped, tag = 'input window, operand 0, single buffered']
    #allocation3 [shape = 's32[2]{0}', space=sflag, size = 0x8, scoped, tag = 'scoped memory for tpu_custom_call.1']
    #allocation4 [shape = 's32[2]{0}', space=sflag, size = 0x8, scoped, tag = 'scoped memory for tpu_custom_call.1']
    #allocation5 [shape = 'u8[131072]{0}', space=vmem, size = 0x20000, scoped, tag = 'input window, operand 1']
    #allocation6 [shape = 's32[2]{0}', space=sflag, size = 0x8, scoped, tag = 'scoped memory for tpu_custom_call.1']
    #allocation7 [shape = 'u8[16384]{0}', space=vmem, size = 0x4000, scoped, tag = 'output window, operand 0']
    %8 = vsyncpa [#allocation3], 0
    %9 = vsyncpa [#allocation6], 0
    %s10 = scalar_lea.sflag [#allocation6], 1
    %11 = vsyncpa %s10, 0
    %12 = vsyncpa [#allocation4], 0
    %s13 = scalar_lea.sflag [#allocation4], 1
    %14 = vsyncpa %s13, 0
    loop: start=0, step=1, limit=4
    $region2: #{tpu_custom_call.1} parent=1 // loop_pre_header
      _
    $region3: #{tpu_custom_call.1} parent=1 // loop_header
      %s16 = sphi 0, %s20
      %p17 = scmp.ge.s32.totalorder %s16, 4
      %s23 = sphi 0, %s35
      %s24 = sphi 0, %s31
      %s25 = sphi 0, %s23
      %s26 = sphi 0, %s24
      %s27 = sphi 0, %s25
      %s28 = sphi 0, %s26
      %s38 = sphi 0, %s40
      %s41 = sphi 0, %s38
      %s42 = sphi 0, %s41
      %s58 = sphi 0, %s42
      %s64 = sphi 0, %s66
      %s67 = sphi 0, %s64
      %s68 = sphi 0, %s67
      %s84 = sphi 0, %s68
      %s90 = sphi 0, %s92
      %s93 = sphi 0, %s90
      %s94 = sphi 0, %s93
      %s110 = sphi 0, %s94
      %s118 = sphi 0, %s120
      %s121 = sphi 0, %s118
      %s122 = sphi 0, %s121
      %s138 = sphi 0, %s122
    $region4: #{tpu_custom_call.1} parent=1 // loop_header_branch
      %19 = sbr.rel (%p17) target = $region8
    $region5: #{tpu_custom_call.1} parent=1 // loop_body
      %s21 = ssub.s32 %s16, 1
      %s22 = ssub.s32 %s16, 2
      %s29 = sadd.s32 1, %s24
      %p30 = scmp.ge.s32.totalorder %s29, 1
      %s31 = scalar_select %p30, 0, %s29
      %s32 = sadd.s32 1, %s23
      %s33 = scalar_select %p30, %s32, %s23
      %p34 = scmp.ge.s32.totalorder %s33, 2
      %s35 = scalar_select %p34, 0, %s33
      %s36 = ssub.s32 %s24, %s31
      %p37 = scmp.eq.s32.totalorder %s36, 0
      %s39 = sadd.s32 %s38, 1
      %s40 = scalar_select %p37, %s38, %s39
      %p43 = pneg %p37
      %p44 = scmp.eq.s32.totalorder %s16, 1
      %p45 = por %p43, %p44
      %p46 = scmp.ne.s32.totalorder %s38, %s41
      %p47 = scmp.eq.s32.totalorder %s16, 0
      %p48 = por %p46, %p47
      %p49 = scmp.ne.s32.totalorder %s38, %s41
      %p50 = scmp.eq.s32.totalorder %s21, 1
      %p51 = por %p49, %p50
      %p52 = scmp.ne.s32.totalorder %s41, %s42
      %p53 = scmp.eq.s32.totalorder %s21, 0
      %p54 = por %p52, %p53
      %p55 = scmp.ne.s32.totalorder %s41, %s42
      %p56 = scmp.eq.s32.totalorder %s22, 1
      %p57 = por %p55, %p56
      %p59 = scmp.ne.s32.totalorder %s42, %s58
      %p60 = scmp.eq.s32.totalorder %s22, 0
      %p61 = por %p59, %p60
      %s62 = ssub.s32 %s23, %s35
      %p63 = scmp.eq.s32.totalorder %s62, 0
      %s65 = sadd.s32 %s64, 1
      %s66 = scalar_select %p63, %s64, %s65
      %p69 = pneg %p63
      %p70 = scmp.eq.s32.totalorder %s16, 1
      %p71 = por %p69, %p70
      %p72 = scmp.ne.s32.totalorder %s64, %s67
      %p73 = scmp.eq.s32.totalorder %s16, 0
      %p74 = por %p72, %p73
      %p75 = scmp.ne.s32.totalorder %s64, %s67
      %p76 = scmp.eq.s32.totalorder %s21, 1
      %p77 = por %p75, %p76
      %p78 = scmp.ne.s32.totalorder %s67, %s68
      %p79 = scmp.eq.s32.totalorder %s21, 0
      %p80 = por %p78, %p79
      %p81 = scmp.ne.s32.totalorder %s67, %s68
      %p82 = scmp.eq.s32.totalorder %s22, 1
      %p83 = por %p81, %p82
      %p85 = scmp.ne.s32.totalorder %s68, %s84
      %p86 = scmp.eq.s32.totalorder %s22, 0
      %p87 = por %p85, %p86
      %s88 = ssub.s32 %s23, %s35
      %p89 = scmp.eq.s32.totalorder %s88, 0
      %s91 = sadd.s32 %s90, 1
      %s92 = scalar_select %p89, %s90, %s91
      %p95 = pneg %p89
      %p96 = scmp.eq.s32.totalorder %s16, 1
      %p97 = por %p95, %p96
      %p98 = scmp.ne.s32.totalorder %s90, %s93
      %p99 = scmp.eq.s32.totalorder %s16, 0
      %p100 = por %p98, %p99
      %p101 = scmp.ne.s32.totalorder %s90, %s93
      %p102 = scmp.eq.s32.totalorder %s21, 1
      %p103 = por %p101, %p102
      %p104 = scmp.ne.s32.totalorder %s93, %s94
      %p105 = scmp.eq.s32.totalorder %s21, 0
      %p106 = por %p104, %p105
      %p107 = scmp.ne.s32.totalorder %s93, %s94
      %p108 = scmp.eq.s32.totalorder %s22, 1
      %p109 = por %p107, %p108
      %p111 = scmp.ne.s32.totalorder %s94, %s110
      %p112 = scmp.eq.s32.totalorder %s22, 0
      %p113 = por %p111, %p112
      %s114 = ssub.s32 %s24, %s31
      %s115 = ssub.s32 %s23, %s35
      %s116 = sor.u32 %s114, %s115
      %p117 = scmp.eq.s32.totalorder %s116, 0
      %s119 = sadd.s32 %s118, 1
      %s120 = scalar_select %p117, %s118, %s119
      %p123 = pneg %p117
      %p124 = scmp.eq.s32.totalorder %s16, 1
      %p125 = por %p123, %p124
      %p126 = scmp.ne.s32.totalorder %s118, %s121
      %p127 = scmp.eq.s32.totalorder %s16, 0
      %p128 = por %p126, %p127
      %p129 = scmp.ne.s32.totalorder %s118, %s121
      %p130 = scmp.eq.s32.totalorder %s21, 1
      %p131 = por %p129, %p130
      %p132 = scmp.ne.s32.totalorder %s121, %s122
      %p133 = scmp.eq.s32.totalorder %s21, 0
      %p134 = por %p132, %p133
      %p135 = scmp.ne.s32.totalorder %s121, %s122
      %p136 = scmp.eq.s32.totalorder %s22, 1
      %p137 = por %p135, %p136
      %p139 = scmp.ne.s32.totalorder %s122, %s138
      %p140 = scmp.eq.s32.totalorder %s22, 0
      %p141 = por %p139, %p140
      %p142 = scmp.le.s32.totalorder 1, %s16
      %p143 = scmp.lt.s32.totalorder %s16, 3
      %p144 = pnand %p142, %p143
      %p145 = pneg %p144
      // Predicated region
      $region9: #{tpu_custom_call.1} parent=5 // pred_check
        _
      $region10: #{tpu_custom_call.1} parent=5 // pred_check_branch
        %147 = sbr.rel (%p144) target = $region12
      $region11: #{tpu_custom_call.1} parent=5 // pred_region
        %s148 = ssub.s32 %s16, 1
        // Predicated region
        $region13: #{tpu_custom_call.1} parent=11 // pred_check
          %p149 = pneg %p54
        $region14: #{tpu_custom_call.1} parent=11 // pred_check_branch
          %151 = sbr.rel (%p149) target = $region16
        $region15: #{tpu_custom_call.1} parent=11 // pred_region
          %s152 = smul.u32 2, %s26
          %s154 = ssub.s32 128, 128
          %155 = vsyncadd [#allocation3], %s154
          %s156 = smul.addr %s152, 64
          %s157 = scalar_lea.hbm %s0, %s156
          %s158 = sshll.u32 [#allocation2], 4
          %s159 = int_to_ptr.vmem [resolvable:$true] %s158
          %164 = dma.hbm_to_vmem [thread:$0]  %s157, 128, %s159, [#allocation3], 64, 64, 4
        $region16: #{tpu_custom_call.1} parent=11 // pred_fallthru
          _
      $region12: #{tpu_custom_call.1} parent=5 // pred_fallthru
        _
      %p165 = scmp.lt.s32.totalorder %s16, 2
      // Predicated region
      $region17: #{tpu_custom_call.1} parent=5 // pred_check
        %p166 = pneg %p165
      $region18: #{tpu_custom_call.1} parent=5 // pred_check_branch
        %168 = sbr.rel (%p166) target = $region20
      $region19: #{tpu_custom_call.1} parent=5 // pred_region
        // Predicated region
        $region21: #{tpu_custom_call.1} parent=19 // pred_check
          %p169 = pneg %p74
        $region22: #{tpu_custom_call.1} parent=19 // pred_check_branch
          %171 = sbr.rel (%p169) target = $region24
        $region23: #{tpu_custom_call.1} parent=19 // pred_region
          %s172 = sand.u32 %s64, 1
          %s173 = scalar_lea.sflag [#allocation6], %s172
          %s174 = sand.u32 %s64, 1
          %s175 = smul.addr %s174, 128
          %s176 = scalar_lea.vmem [#allocation5], %s175
          %s177 = smul.u32 2, %s23
          %s179 = ssub.s32 2048, 2048
          %180 = vsyncadd %s173, %s179
          %s181 = smul.addr %s177, 64
          %s182 = scalar_lea.hbm %s1, %s181
          %s183 = sshll.u32 %s176, 4
          %s184 = int_to_ptr.vmem [resolvable:$true] %s183
          %189 = dma.hbm_to_vmem [thread:$0]  %s182, 2048, %s184, %s173, 256, 128, 8
        $region24: #{tpu_custom_call.1} parent=19 // pred_fallthru
          _
        // Predicated region
        $region25: #{tpu_custom_call.1} parent=19 // pred_check
          %p190 = pneg %p100
        $region26: #{tpu_custom_call.1} parent=19 // pred_check_branch
          %192 = sbr.rel (%p190) target = $region28
        $region27: #{tpu_custom_call.1} parent=19 // pred_region
          %s193 = smul.u32 2, %s23
          %p194 = scmp.lt.s32.totalorder %s193, 3
          %s195 = scalar_select %p194, %s193, 3
          %s196 = scalar_lea.vmem %s2, %s195
          %s197 = smul.u32 2, %s23
        $region28: #{tpu_custom_call.1} parent=19 // pred_fallthru
          _
      $region20: #{tpu_custom_call.1} parent=5 // pred_fallthru
        _
      %p198 = scmp.le.s32.totalorder 1, %s16
      %p199 = scmp.lt.s32.totalorder %s16, 3
      %p200 = pnand %p198, %p199
      %p201 = pneg %p200
      // Predicated region
      $region29: #{tpu_custom_call.1} parent=5 // pred_check
        _
      $region30: #{tpu_custom_call.1} parent=5 // pred_check_branch
        %203 = sbr.rel (%p200) target = $region32
      $region31: #{tpu_custom_call.1} parent=5 // pred_region
        %s204 = ssub.s32 %s16, 1
        // Predicated region
        $region33: #{tpu_custom_call.1} parent=31 // pred_check
          %p205 = pneg %p54
        $region34: #{tpu_custom_call.1} parent=31 // pred_check_branch
          %207 = sbr.rel (%p205) target = $region36
        $region35: #{tpu_custom_call.1} parent=31 // pred_region
          %208 = dma.done [#allocation3], 128
        $region36: #{tpu_custom_call.1} parent=31 // pred_fallthru
          _
        %s209 = sand.u32 %s67, 1
        %s210 = scalar_lea.sflag [#allocation6], %s209
        %s211 = sand.u32 %s67, 1
        %s212 = smul.addr %s211, 128
        %s213 = scalar_lea.vmem [#allocation5], %s212
        // Predicated region
        $region37: #{tpu_custom_call.1} parent=31 // pred_check
          %p214 = pneg %p80
        $region38: #{tpu_custom_call.1} parent=31 // pred_check_branch
          %216 = sbr.rel (%p214) target = $region40
        $region39: #{tpu_custom_call.1} parent=31 // pred_region
          %217 = dma.done %s210, 2048
        $region40: #{tpu_custom_call.1} parent=31 // pred_fallthru
          _
        %p218 = pneg %p54
        %p219 = pneg %p51
        %s220 = sand.u32 %s67, 1
        %s221 = scalar_lea.sflag [#allocation6], %s220
        %s222 = sand.u32 %s67, 1
        %s223 = smul.addr %s222, 128
        %s224 = scalar_lea.vmem [#allocation5], %s223
        %p225 = pneg %p80
        %p226 = pneg %p77
        %s227 = smul.u32 2, %s25
        %p228 = scmp.lt.s32.totalorder %s227, 3
        %s229 = scalar_select %p228, %s227, 3
        %s230 = scalar_lea.vmem %s2, %s229
        %p231 = pneg %p106
        %p232 = pneg %p103
        %p233 = pneg %p134
        %p234 = pneg %p131
        %s235 = sand.u32 %s121, 1
        %s236 = scalar_lea.sflag [#allocation4], %s235
        %s237 = sand.u32 %s121, 1
        %s238 = smul.addr %s237, 16
        %s239 = scalar_lea.vmem [#allocation7], %s238
        %s240 = smul.u32 2, %s26
        %s241 = smul.u32 2, %s25
        %s242 = smul.u32 2, %s25
        %p243 = scmp.lt.s32.totalorder %s242, 3
        %s244 = scalar_select %p243, %s242, 3
        %s245 = scalar_lea.vmem %s2, %s244
        %s246 = smul.u32 2, %s25
        %s247 = smul.u32 2, %s26
        %s248 = smul.u32 2, %s25
        %v250 = vld [vmem:[#allocation2] sm:$0xf]
        %v251 = vld [vmem:[#allocation2 + $0x4] sm:$0xf]
        %v252 = vld [vmem:[%s213] sm:$0xff]
        %v253 = vld [vmem:[%s213 + $0x8] sm:$0xff]
        %v254 = vld [vmem:[%s213 + $0x10] sm:$0xff]
        %v255 = vld [vmem:[%s213 + $0x18] sm:$0xff]
        %v256 = vld [vmem:[%s213 + $0x20] sm:$0xff]
        %v257 = vld [vmem:[%s213 + $0x28] sm:$0xff]
        %v258 = vld [vmem:[%s213 + $0x30] sm:$0xff]
        %v259 = vld [vmem:[%s213 + $0x38] sm:$0xff]
        %v260 = vld [vmem:[%s213 + $0x40] sm:$0xff]
        %v261 = vld [vmem:[%s213 + $0x48] sm:$0xff]
        %v262 = vld [vmem:[%s213 + $0x50] sm:$0xff]
        %v263 = vld [vmem:[%s213 + $0x58] sm:$0xff]
        %v264 = vld [vmem:[%s213 + $0x60] sm:$0xff]
        %v265 = vld [vmem:[%s213 + $0x68] sm:$0xff]
        %v266 = vld [vmem:[%s213 + $0x70] sm:$0xff]
        %v267 = vld [vmem:[%s213 + $0x78] sm:$0xff]
        %v268 = vld [vmem:[%s245] sm:$0x3]
        %v270 = vlaneseq
        %v271 = vshrl.u32 %v270, 7
        %v272 = vsub.s32 0, %v271
        %v273 = vrot.slane %v268, %v272
        %v274 = vlaneseq
        %v275 = vshrl.u32 %v274, 7
        %v276 = vsub.s32 1, %v275
        %v277 = vrot.slane %v268, %v276
        %v282 = vunpack.c.l.b16 %v250
        %v283 = vunpack.c.l.b16 %v251
        %v284 = vpack.c.b16 %v283, %v282
        %v302 = vunpack.c.l.b16 %v252
        %v303 = vunpack.c.h.b16 %v252
        %v304 = vunpack.c.l.b16 %v253
        %v305 = vunpack.c.h.b16 %v253
        %v306 = vunpack.c.l.b16 %v254
        %v307 = vunpack.c.h.b16 %v254
        %v308 = vunpack.c.l.b16 %v255
        %v309 = vunpack.c.h.b16 %v255
        %v310 = vunpack.c.l.b16 %v256
        %v311 = vunpack.c.h.b16 %v256
        %v312 = vunpack.c.l.b16 %v257
        %v313 = vunpack.c.h.b16 %v257
        %v314 = vunpack.c.l.b16 %v258
        %v315 = vunpack.c.h.b16 %v258
        %v316 = vunpack.c.l.b16 %v259
        %v317 = vunpack.c.h.b16 %v259
        %v318 = vunpack.c.l.b16 %v260
        %v319 = vunpack.c.h.b16 %v260
        %v320 = vunpack.c.l.b16 %v261
        %v321 = vunpack.c.h.b16 %v261
        %v322 = vunpack.c.l.b16 %v262
        %v323 = vunpack.c.h.b16 %v262
        %v324 = vunpack.c.l.b16 %v263
        %v325 = vunpack.c.h.b16 %v263
        %v326 = vunpack.c.l.b16 %v264
        %v327 = vunpack.c.h.b16 %v264
        %v328 = vunpack.c.l.b16 %v265
        %v329 = vunpack.c.h.b16 %v265
        %v330 = vunpack.c.l.b16 %v266
        %v331 = vunpack.c.h.b16 %v266
        %v332 = vunpack.c.l.b16 %v267
        %v333 = vunpack.c.h.b16 %v267
        %v334 = vpack.c.b16 %v304, %v302
        %v335 = vpack.c.b16 %v305, %v303
        %v336 = vpack.c.b16 %v308, %v306
        %v337 = vpack.c.b16 %v309, %v307
        %v338 = vpack.c.b16 %v312, %v310
        %v339 = vpack.c.b16 %v313, %v311
        %v340 = vpack.c.b16 %v316, %v314
        %v341 = vpack.c.b16 %v317, %v315
        %v342 = vpack.c.b16 %v320, %v318
        %v343 = vpack.c.b16 %v321, %v319
        %v344 = vpack.c.b16 %v324, %v322
        %v345 = vpack.c.b16 %v325, %v323
        %v346 = vpack.c.b16 %v328, %v326
        %v347 = vpack.c.b16 %v329, %v327
        %v348 = vpack.c.b16 %v332, %v330
        %v349 = vpack.c.b16 %v333, %v331
        %366 = vmatprep.subr.bf16.mxu0 %v335
        %367 = vmatpush1.bf16.msra.mxu0 %v334
        %368 = vmatprep.subr.bf16.mxu0 %v337
        %369 = vmatpush1.bf16.msra.mxu0 %v336
        %370 = vmatprep.subr.bf16.mxu0 %v339
        %371 = vmatpush1.bf16.msra.mxu0 %v338
        %372 = vmatprep.subr.bf16.mxu0 %v341
        %373 = vmatpush1.bf16.msra.mxu0 %v340
        %374 = vmatprep.subr.bf16.mxu0 %v343
        %375 = vmatpush1.bf16.msra.mxu0 %v342
        %376 = vmatprep.subr.bf16.mxu0 %v345
        %377 = vmatpush1.bf16.msra.mxu0 %v344
        %378 = vmatprep.subr.bf16.mxu0 %v347
        %379 = vmatpush1.bf16.msra.mxu0 %v346
        %380 = vmatprep.subr.bf16.mxu0 %v349
        %381 = vmatpush1.bf16.msra.mxu0 %v348
        %382 = vmatprep.subr.bf16.mxu0 0
        %383 = vmatpush1.bf16.msra.mxu0 0
        %384 = vmatprep.subr.bf16.mxu0 0
        %385 = vmatpush1.bf16.msra.mxu0 0
        %386 = vmatprep.subr.bf16.mxu0 0
        %387 = vmatpush1.bf16.msra.mxu0 0
        %388 = vmatprep.subr.bf16.mxu0 0
        %389 = vmatpush1.bf16.msra.mxu0 0
        %390 = vmatprep.subr.bf16.mxu0 0
        %391 = vmatpush1.bf16.msra.mxu0 0
        %392 = vmatprep.subr.bf16.mxu0 0
        %393 = vmatpush1.bf16.msra.mxu0 0
        %394 = vmatprep.subr.bf16.mxu0 0
        %395 = vmatpush1.bf16.msra.mxu0 0
        %396 = vmatprep.subr.bf16.mxu0 0
        %397 = vmatpush1.bf16.msra.mxu0 0
        %398 = vmatprep.mubr.bf16.mxu0 0
        %399 = vmatmul.mubr.bf16.gmra.mrb[0].mxu0 %v284
        %v400 = vpop.f32.mrb[0].mxu0
        %v401 = vadd.f32 %v273, %v400
        %v402 = vpop.f32.mrb[0].mxu0
        %v403 = vadd.f32 %v277, %v402
        %v404 = vpop.f32.mrb[0].mxu0
        %v405 = vadd.f32 %v273, %v404
        %v406 = vpop.f32.mrb[0].mxu0
        %v407 = vadd.f32 %v277, %v406
        %408 = vdwg.mxu0
        %v409 = vpack.c.bf16 %v405, %v401
        %v410 = vpack.c.bf16 %v407, %v403
        %v413 = vunpack.c.l.b16 %v409
        %v414 = vunpack.c.l.b16 %v410
        %v415 = vunpack.c.h.b16 %v409
        %v416 = vunpack.c.h.b16 %v410
        %v417 = vpack.c.b16 %v414, %v413
        %v418 = vpack.c.b16 %v416, %v415
        %421 = vst [vmem:[%s239] sm:$0xff] %v417
        %422 = vst [vmem:[%s239 + $0x8] sm:$0xff] %v418
        %s423 = sand.u32 %s121, 1
        %s424 = scalar_lea.sflag [#allocation4], %s423
        %s425 = sand.u32 %s121, 1
        %s426 = smul.addr %s425, 16
        %s427 = scalar_lea.vmem [#allocation7], %s426
        // Predicated region
        $region41: #{tpu_custom_call.1} parent=31 // pred_check
          %p428 = pneg %p131
        $region42: #{tpu_custom_call.1} parent=31 // pred_check_branch
          %430 = sbr.rel (%p428) target = $region44
        $region43: #{tpu_custom_call.1} parent=31 // pred_region
          %s431 = smul.u32 2, %s26
          %s432 = smul.u32 2, %s25
          %s434 = ssub.s32 256, 256
          %435 = vsyncadd %s424, %s434
          %s436 = smul.addr %s431, 4
          %s437 = sadd.s32 %s432, %s436
          %s438 = smul.addr %s437, 64
          %s439 = scalar_lea.hbm %s3, %s438
          %s440 = sshll.u32 %s427, 4
          %s441 = int_to_ptr.vmem [resolvable:$true] %s440
          %446 = dma.vmem_to_hbm [thread:$0]  %s441, 256, %s439, %s424, 128, 256, 8
        $region44: #{tpu_custom_call.1} parent=31 // pred_fallthru
          _
      $region32: #{tpu_custom_call.1} parent=5 // pred_fallthru
        _
      %p447 = scmp.le.s32.totalorder 2, %s16
      // Predicated region
      $region45: #{tpu_custom_call.1} parent=5 // pred_check
        %p448 = pneg %p447
      $region46: #{tpu_custom_call.1} parent=5 // pred_check_branch
        %450 = sbr.rel (%p448) target = $region48
      $region47: #{tpu_custom_call.1} parent=5 // pred_region
        %s451 = ssub.s32 %s16, 2
        // Predicated region
        $region49: #{tpu_custom_call.1} parent=47 // pred_check
          %p452 = pneg %p137
        $region50: #{tpu_custom_call.1} parent=47 // pred_check_branch
          %454 = sbr.rel (%p452) target = $region52
        $region51: #{tpu_custom_call.1} parent=47 // pred_region
          %s455 = sand.u32 %s122, 1
          %s456 = scalar_lea.sflag [#allocation4], %s455
          %s457 = sand.u32 %s122, 1
          %s458 = smul.addr %s457, 16
          %s459 = scalar_lea.vmem [#allocation7], %s458
          %460 = dma.done %s456, 256
        $region52: #{tpu_custom_call.1} parent=47 // pred_fallthru
          _
      $region48: #{tpu_custom_call.1} parent=5 // pred_fallthru
        _
    $region6: #{tpu_custom_call.1} parent=1 // loop_footer
      %s20 = sadd.s32 1, %s16
    $region7: #{tpu_custom_call.1} parent=1 // loop_footer_branch
      %15 = sbr.rel target = $region3
    $region8: #{tpu_custom_call.1} parent=1 // loop_exit
      _
    %461 = vsyncpa [#allocation3], 1
    %s462 = scalar_lea.sflag [#allocation3], 1
    %463 = vsyncpa %s462, 1
    %464 = vsyncpa [#allocation6], 1
    %s465 = scalar_lea.sflag [#allocation6], 1
    %466 = vsyncpa %s465, 1
    %467 = vsyncpa [#allocation4], 1
    %s468 = scalar_lea.sflag [#allocation4], 1
    %469 = vsyncpa %s468, 1

</llo_original>
